<compile_context>
chip_gen: v7x
topology: tpu7x:2x2x1
jax: 0.10.0
libtpu: 0.0.40
codegen_flags: <defaults>
</compile_context>

<pallas_src>
import jax
import jax.numpy as jnp
from jax.experimental import pallas as pl
from jax.experimental.pallas import tpu as pltpu


def _round_up(a, b):
    return (a + b - 1) // b * b


def _vmem_capacity_bytes():
    """Physical VMEM per core; conservative 64 MiB fallback if query fails."""
    try:
        info = pltpu.get_tpu_info()
        cap = int(getattr(info, "vmem_capacity_bytes"))
        if cap > 0:
            return cap
    except Exception:
        pass
    return 64 * 1024 * 1024


# ----------------------------- kernels ------------------------------------

def _ffn_kernel(x_ref, w1_ref, b1_ref, w2_ref, b2_ref, o_ref, acc_ref):
    k = pl.program_id(1)

    @pl.when(k == 0)
    def _init():
        # Fold the second-layer bias into the accumulator init (no zero-fill pass).
        acc_ref[...] = jnp.broadcast_to(b2_ref[...], acc_ref.shape)

    # h_chunk = relu(x @ W1[:, chunk] + b1[chunk])   (f32 MXU accumulation)
    h = jnp.dot(x_ref[...], w1_ref[...], preferred_element_type=jnp.float32)
    h = jnp.maximum(h + b1_ref[...], 0.0)
    # dropout: identity (eval mode)
    acc_ref[...] += jnp.dot(h.astype(w2_ref.dtype), w2_ref[...],
                            preferred_element_type=jnp.float32)

    @pl.when(k == pl.num_programs(1) - 1)
    def _finish():
        o_ref[...] = acc_ref[...].astype(o_ref.dtype)


def _ffn_gated_kernel(x_ref, w1_ref, b1_ref, wv_ref, bv_ref, w2_ref, b2_ref,
                      o_ref, acc_ref):
    k = pl.program_id(1)

    @pl.when(k == 0)
    def _init():
        acc_ref[...] = jnp.broadcast_to(b2_ref[...], acc_ref.shape)

    # Two separate (d_model, tk) MXU passes (no fused 2*tk block / lane slicing).
    g = jnp.dot(x_ref[...], w1_ref[...], preferred_element_type=jnp.float32)
    g = jnp.maximum(g + b1_ref[...], 0.0)
    v = jnp.dot(x_ref[...], wv_ref[...], preferred_element_type=jnp.float32)
    v = v + bv_ref[...]
    h = g * v
    # dropout: identity (eval mode)
    acc_ref[...] += jnp.dot(h.astype(w2_ref.dtype), w2_ref[...],
                            preferred_element_type=jnp.float32)

    @pl.when(k == pl.num_programs(1) - 1)
    def _finish():
        o_ref[...] = acc_ref[...].astype(o_ref.dtype)


# ----------------------------- wrapper ------------------------------------

def make_feed_forward(params, *, is_gated=False, tm=None, tk=None,
                      compute_dtype=jnp.bfloat16):
    """One-time setup: pads d_ff to the tile grid and casts weights to the compute
    dtype ONCE, then returns apply(x) -> y with x: (batch, seq, d_model).

    params: w1:(d_model,d_ff) b1:(d_ff,) w2:(d_ff,d_model) b2:(d_model,)
            [+ wv:(d_model,d_ff) bv:(d_ff,) if gated]   (pre-transposed vs nn.Linear).
    tm: rows per M tile.  Default is generation-aware: largest of {512,256,128} that
        fits ~80% of VMEM (tm>=256 recommended on v5e/v6e; smaller on v7x's 64 MiB).
    tk: d_ff chunk per reduction step (multiple of 128; keep >= 512 when possible)."""
    d_model, d_ff = params["w1"].shape
    vmem_cap = _vmem_capacity_bytes()

    # ---- d_ff tiling (fixed at prep time; weight padding depends on it) ----
    if tk is None:
        tk = 512
    tk = _round_up(min(tk, _round_up(d_ff, 128)), 128)
    k_pad = _round_up(d_ff, tk)
    n_k = k_pad // tk

    # ---- one-time weight prep (pad + cast); zero pads contribute exactly zero ----
    def pad_cols(w):
        return jnp.pad(w, ((0, 0), (0, k_pad - d_ff))) if k_pad != d_ff else w

    def pad_rows(w):
        return jnp.pad(w, ((0, k_pad - d_ff), (0, 0))) if k_pad != d_ff else w

    def pad_vec(b):
        return jnp.pad(b, (0, k_pad - d_ff)) if k_pad != d_ff else b

    prepped = {
        "w1": pad_cols(params["w1"]).astype(compute_dtype),
        "b1": pad_vec(params["b1"]).astype(jnp.float32).reshape(1, k_pad),
        "w2": pad_rows(params["w2"]).astype(compute_dtype),
        "b2": params["b2"].astype(jnp.float32).reshape(1, d_model),
    }
    if is_gated:
        prepped["wv"] = pad_cols(params["wv"]).astype(compute_dtype)
        prepped["bv"] = pad_vec(params["bv"]).astype(jnp.float32).reshape(1, k_pad)
    prepped = {k: jax.block_until_ready(v) for k, v in prepped.items()}

    cb = jnp.dtype(compute_dtype).itemsize
    n_w1 = 2 if is_gated else 1

    def _vmem_est(tm_, out_itemsize):
        # double-buffered inputs + double-buffered output + f32 accumulator
        ins = (tm_ * d_model + n_w1 * d_model * tk + tk * d_model) * cb
        ins += (n_w1 * tk + d_model) * 4
        return 2 * ins + 2 * tm_ * d_model * out_itemsize + tm_ * d_model * 4

    def apply(x):
        b, s, dm = x.shape
        assert dm == d_model, f"expected d_model={d_model}, got {dm}"
        M = b * s
        out_dtype = x.dtype
        ob = jnp.dtype(out_dtype).itemsize
        budget = int(0.80 * vmem_cap)

        # ---- choose tm (cheap trace-time logic; never touches weights) ----
        tm_ = tm
        if tm_ is None:
            tm_ = 128
            for cand in (512, 256, 128):
                if _vmem_est(cand, ob) <= budget:
                    tm_ = cand
                    break
        # Alignment: multiple of 256 (MXU tile) for large M, else multiple of 16
        # (bf16 sublane packing) so Mosaic avoids relayouts / masked stores.
        if M >= 256:
            tm_ = _round_up(min(tm_, _round_up(M, 256)), 256)
        else:
            tm_ = _round_up(min(tm_, _round_up(M, 16)), 16)

        m_pad = _round_up(M, tm_)
        n_m = m_pad // tm_

        # ---- per-call activation prep only ----
        x2d = x.reshape(M, d_model)
        if m_pad != M:
            x2d = jnp.pad(x2d, ((0, m_pad - M), (0, 0)))
        x2d = x2d.astype(compute_dtype)

        row_x = lambda i, k: (i, 0)
        col_k = lambda i, k: (0, k)
        row_k = lambda i, k: (k, 0)
        fixed = lambda i, k: (0, 0)

        if not is_gated:
            kernel = _ffn_kernel
            inputs = (x2d, prepped["w1"], prepped["b1"], prepped["w2"], prepped["b2"])
            in_specs = [
                pl.BlockSpec((tm_, d_model), row_x),
                pl.BlockSpec((d_model, tk), col_k),
                pl.BlockSpec((1, tk), col_k),
                pl.BlockSpec((tk, d_model), row_k),
                pl.BlockSpec((1, d_model), fixed),
            ]
        else:
            kernel = _ffn_gated_kernel
            inputs = (x2d, prepped["w1"], prepped["b1"], prepped["wv"],
                      prepped["bv"], prepped["w2"], prepped["b2"])
            in_specs = [
                pl.BlockSpec((tm_, d_model), row_x),
                pl.BlockSpec((d_model, tk), col_k),
                pl.BlockSpec((1, tk), col_k),
                pl.BlockSpec((d_model, tk), col_k),
                pl.BlockSpec((1, tk), col_k),
                pl.BlockSpec((tk, d_model), row_k),
                pl.BlockSpec((1, d_model), fixed),
            ]

        # ---- resource hints (generation-aware VMEM limit, ~15% headroom) ----
        est = _vmem_est(tm_, ob)
        vmem_limit = int(min(max(2 * est, 32 * 1024 * 1024), int(0.85 * vmem_cap)))

        flops = 2 * m_pad * d_model * k_pad * (n_w1 + 1)
        bytes_accessed = (2 * m_pad * d_model) * max(cb, ob) \
                         + n_m * (n_w1 + 1) * k_pad * d_model * cb
        cost = pl.CostEstimate(flops=int(flops), transcendentals=0,
                               bytes_accessed=int(bytes_accessed))

        out = pl.pallas_call(
            kernel,
            out_shape=jax.ShapeDtypeStruct((m_pad, d_model), out_dtype),
            grid_spec=pltpu.PrefetchScalarGridSpec(
                num_scalar_prefetch=0,
                grid=(n_m, n_k),
                in_specs=in_specs,
                out_specs=pl.BlockSpec((tm_, d_model), row_x),
                scratch_shapes=[pltpu.VMEM((tm_, d_model), jnp.float32)],
            ),
            compiler_params=pltpu.CompilerParams(
                dimension_semantics=("parallel", "arbitrary"),
                vmem_limit_bytes=vmem_limit,
            ),
            cost_estimate=cost,
        )(*inputs)

        if m_pad != M:
            out = out[:M]
        return out.reshape(b, s, d_model)

    return apply


# ----------------------------- reference / test ----------------------------

def _ref_feed_forward(x, params, *, is_gated=False):
    g = jnp.maximum(x @ params["w1"] + params["b1"], 0.0)
    if is_gated:
        g = g * (x @ params["wv"] + params["bv"])
    return g @ params["w2"] + params["b2"]


def _init_params(key, d_model, d_ff, is_gated=False):
    ks = jax.random.split(key, 6)
    # Mimic nn.Linear's uniform(-1/sqrt(fan_in), 1/sqrt(fan_in)); stored pre-transposed.
    lim1 = 1.0 / (d_model ** 0.5)
    lim2 = 1.0 / (d_ff ** 0.5)
    params = {
        "w1": jax.random.uniform(ks[0], (d_model, d_ff), jnp.float32, -lim1, lim1),
        "b1": jax.random.uniform(ks[1], (d_ff,), jnp.float32, -lim1, lim1),
        "w2": jax.random.uniform(ks[2], (d_ff, d_model), jnp.float32, -lim2, lim2),
        "b2": jax.random.uniform(ks[3], (d_model,), jnp.float32, -lim2, lim2),
    }
    if is_gated:
        params["wv"] = jax.random.uniform(ks[4], (d_model, d_ff), jnp.float32, -lim1, lim1)
        params["bv"] = jax.random.uniform(ks[5], (d_ff,), jnp.float32, -lim1, lim1)
    return params


if __name__ == "__main__":
    key = jax.random.PRNGKey(0)
    k_x, k_p, k_pg = jax.random.split(key, 3)

    batch, seq, d_model, d_ff = 2, 8, 32, 64
    x = jax.random.normal(k_x, (batch, seq, d_model), jnp.float32)

    # default (non-gated) FeedForward
    params = _init_params(k_p, d_model, d_ff, is_gated=False)
    ffn = jax.jit(make_feed_forward(params, is_gated=False))
    out = jax.block_until_ready(ffn(x))
    ref = _ref_feed_forward(x, params, is_gated=False)
    assert out.shape == (batch, seq, d_model)
    # bf16 MXU compute with f32 accumulation vs f32 reference -> loosened tolerance.
    assert jnp.allclose(out, ref, atol=3e-2, rtol=3e-2), \
        float(jnp.max(jnp.abs(out - ref)))

    # gated variant (is_gated=True)
    params_g = _init_params(k_pg, d_model, d_ff, is_gated=True)
    ffn_g = jax.jit(make_feed_forward(params_g, is_gated=True))
    out_g = jax.block_until_ready(ffn_g(x))
    ref_g = _ref_feed_forward(x, params_g, is_gated=True)
    assert jnp.allclose(out_g, ref_g, atol=3e-2, rtol=3e-2), \
        float(jnp.max(jnp.abs(out_g - ref_g)))

    print("KERNEL_OK")
</pallas_src>

<mosaic_0001>
module attributes {stable_mosaic.version = 11 : i64} {
  func.func @_ffn_kernel(%arg0: i32, %arg1: i32, %arg2: memref<16x32xbf16, #tpu.memory_space<vmem>>, %arg3: memref<32x128xbf16, #tpu.memory_space<vmem>>, %arg4: memref<1x128xf32, #tpu.memory_space<vmem>>, %arg5: memref<128x32xbf16, #tpu.memory_space<vmem>>, %arg6: memref<1x32xf32, #tpu.memory_space<vmem>>, %arg7: memref<16x32xf32, #tpu.memory_space<vmem>>, %arg8: memref<16x32xf32, #tpu.memory_space<vmem>>) attributes {dimension_semantics = [#tpu.dimension_semantics<parallel>, #tpu.dimension_semantics<arbitrary>], iteration_bounds = array<i64: 1, 1>, scalar_prefetch = 0 : i64, scratch_operands = 1 : i64, tpu.core_type = #tpu.core_type<tc>, window_params = [{transform_indices = @transform_0, window_bounds = array<i64: 16, 32>}, {transform_indices = @transform_1, window_bounds = array<i64: 32, 128>}, {transform_indices = @transform_2, window_bounds = array<i64: 1, 128>}, {transform_indices = @transform_3, window_bounds = array<i64: 128, 32>}, {pipeline_mode = #tpu.pipeline_mode<synchronous>, transform_indices = @transform_4, window_bounds = array<i64: 1, 32>}, {transform_indices = @transform_5, window_bounds = array<i64: 16, 32>}]} {
    %c0_i32 = arith.constant 0 : i32
    %0 = arith.cmpi eq, %arg1, %c0_i32 : i32
    %1 = arith.extui %0 : i1 to i32
    %c0_i32_0 = arith.constant 0 : i32
    %2 = arith.cmpi ne, %1, %c0_i32_0 : i32
    scf.if %2 {
      %c0_16 = arith.constant 0 : index
      %c0_17 = arith.constant 0 : index
      %20 = vector.load %arg6[%c0_16, %c0_17] : memref<1x32xf32, #tpu.memory_space<vmem>>, vector<1x32xf32>
      %21 = vector.shape_cast %20 : vector<1x32xf32> to vector<1x32xf32>
      %22 = vector.broadcast %21 : vector<1x32xf32> to vector<16x32xf32>
      %c0_18 = arith.constant 0 : index
      %c0_19 = arith.constant 0 : index
      %23 = vector.load %arg8[%c0_18, %c0_19] : memref<16x32xf32, #tpu.memory_space<vmem>>, vector<16x32xf32>
      tpu.vector_store %arg8[%c0_18, %c0_19], %22 {strides = array<i32>} : memref<16x32xf32, #tpu.memory_space<vmem>>, vector<16x32xf32>,
    } else {
    }
    %c0 = arith.constant 0 : index
    %c0_1 = arith.constant 0 : index
    %3 = vector.load %arg2[%c0, %c0_1] : memref<16x32xbf16, #tpu.memory_space<vmem>>, vector<16x32xbf16>
    %c0_2 = arith.constant 0 : index
    %c0_3 = arith.constant 0 : index
    %4 = vector.load %arg3[%c0_2, %c0_3] : memref<32x128xbf16, #tpu.memory_space<vmem>>, vector<32x128xbf16>
    %cst = arith.constant dense<0.000000e+00> : vector<16x128xf32>
    %5 = tpu.matmul %3, %4, %cst {dimension_numbers = #tpu.dot_dimension_numbers<[1], [0], [0], [1], [0, 0, 1, 1], [], []>} : vector<16x32xbf16>, vector<32x128xbf16>, vector<16x128xf32> -> vector<16x128xf32>
    %c0_4 = arith.constant 0 : index
    %c0_5 = arith.constant 0 : index
    %6 = vector.load %arg4[%c0_4, %c0_5] : memref<1x128xf32, #tpu.memory_space<vmem>>, vector<1x128xf32>
    %7 = vector.broadcast %6 : vector<1x128xf32> to vector<16x128xf32>
    %8 = arith.addf %5, %7 : vector<16x128xf32>
    %cst_6 = arith.constant 0.000000e+00 : f32
    %9 = vector.broadcast %cst_6 : f32 to vector<16x128xf32>
    %10 = arith.maximumf %8, %9 : vector<16x128xf32>
    %c0_7 = arith.constant 0 : index
    %c0_8 = arith.constant 0 : index
    %11 = vector.load %arg8[%c0_7, %c0_8] : memref<16x32xf32, #tpu.memory_space<vmem>>, vector<16x32xf32>
    %12 = arith.truncf %10 : vector<16x128xf32> to vector<16x128xbf16>
    %c0_9 = arith.constant 0 : index
    %c0_10 = arith.constant 0 : index
    %13 = vector.load %arg5[%c0_9, %c0_10] : memref<128x32xbf16, #tpu.memory_space<vmem>>, vector<128x32xbf16>
    %cst_11 = arith.constant dense<0.000000e+00> : vector<16x32xf32>
    %14 = tpu.matmul %12, %13, %cst_11 {dimension_numbers = #tpu.dot_dimension_numbers<[1], [0], [0], [1], [0, 0, 1, 1], [], []>} : vector<16x128xbf16>, vector<128x32xbf16>, vector<16x32xf32> -> vector<16x32xf32>
    %15 = arith.addf %11, %14 : vector<16x32xf32>
    %c0_12 = arith.constant 0 : index
    %c0_13 = arith.constant 0 : index
    %16 = vector.load %arg8[%c0_12, %c0_13] : memref<16x32xf32, #tpu.memory_space<vmem>>, vector<16x32xf32>
    tpu.vector_store %arg8[%c0_12, %c0_13], %15 {strides = array<i32>} : memref<16x32xf32, #tpu.memory_space<vmem>>, vector<16x32xf32>,
    %c0_i32_14 = arith.constant 0 : i32
    %17 = arith.cmpi eq, %arg1, %c0_i32_14 : i32
    %18 = arith.extui %17 : i1 to i32
    %c0_i32_15 = arith.constant 0 : i32
    %19 = arith.cmpi ne, %18, %c0_i32_15 : i32
    scf.if %19 {
      %c0_16 = arith.constant 0 : index
      %c0_17 = arith.constant 0 : index
      %20 = vector.load %arg8[%c0_16, %c0_17] : memref<16x32xf32, #tpu.memory_space<vmem>>, vector<16x32xf32>
      %c0_18 = arith.constant 0 : index
      %c0_19 = arith.constant 0 : index
      %21 = vector.load %arg7[%c0_18, %c0_19] : memref<16x32xf32, #tpu.memory_space<vmem>>, vector<16x32xf32>
      tpu.vector_store %arg7[%c0_18, %c0_19], %20 {strides = array<i32>} : memref<16x32xf32, #tpu.memory_space<vmem>>, vector<16x32xf32>,
    } else {
    }
    return
  }
  func.func @transform_0(%arg0: i32, %arg1: i32) -> (i32, i32) {
    %c0_i32 = arith.constant 0 : i32
    %c0_i32_0 = arith.constant 0 : i32
    return %arg0, %c0_i32 : i32, i32
  }
  func.func @transform_1(%arg0: i32, %arg1: i32) -> (i32, i32) {
    %c0_i32 = arith.constant 0 : i32
    %c0_i32_0 = arith.constant 0 : i32
    return %c0_i32, %arg1 : i32, i32
  }
  func.func @transform_2(%arg0: i32, %arg1: i32) -> (i32, i32) {
    %c0_i32 = arith.constant 0 : i32
    %c0_i32_0 = arith.constant 0 : i32
    return %c0_i32, %arg1 : i32, i32
  }
  func.func @transform_3(%arg0: i32, %arg1: i32) -> (i32, i32) {
    %c0_i32 = arith.constant 0 : i32
    %c0_i32_0 = arith.constant 0 : i32
    return %arg1, %c0_i32 : i32, i32
  }
  func.func @transform_4(%arg0: i32, %arg1: i32) -> (i32, i32) {
    %c0_i32 = arith.constant 0 : i32
    %c0_i32_0 = arith.constant 0 : i32
    %c0_i32_1 = arith.constant 0 : i32
    return %c0_i32, %c0_i32_0 : i32, i32
  }
  func.func @transform_5(%arg0: i32, %arg1: i32) -> (i32, i32) {
    %c0_i32 = arith.constant 0 : i32
    %c0_i32_0 = arith.constant 0 : i32
    return %arg0, %c0_i32 : i32, i32
  }
}

</mosaic_0001>

<llo_original>
// kernel: apply.1
$region0: #{apply.1}
  #allocation0 [shape = 'u32[]', space=smem, size = 0x4, offset = 0x4, fixed_abs, tag = 'smem constant byte address 0x4 - core index']
  #allocation1 [shape = 'u32[144,128]{1,0:T(1,128)}', space=vmem, size = 0x12000, scoped, tag = 'internal scratch']
  #allocation2 [shape = 'f32[16,32]{1,0:T(8,128)}', space=vmem, size = 0x2000, scoped, tag = 'scratch operand']
  %s0 = inlined_call_operand.vmem [shape: bf16[16,32], index: 0, kind: input, shape index: {}]
  %s1 = inlined_call_operand.vmem [shape: bf16[32,128], index: 1, kind: input, shape index: {}]
  %s2 = inlined_call_operand.vmem [shape: f32[1,128], index: 2, kind: input, shape index: {}]
  %s3 = inlined_call_operand.hbm [shape: bf16[128,32], index: 3, kind: input, shape index: {}]
  %s4 = inlined_call_operand.vmem [shape: f32[1,32], index: 4, kind: input, shape index: {}]
  %s5 = inlined_call_operand.hbm [shape: f32[16,32], index: 5, kind: output, shape index: {}]
  %s6 = sld [smem:[#allocation0]]
  $region42: #{apply.1} parent=0
    _
  %s8 = ssub.s32 1, %s6
  %s9 = scalar_select 0, %s8, %s6
  $region1: #{apply.1} parent=0
    #allocation3 [shape = 'u8[32768]{0}', space=vmem, size = 0x8000, scoped, tag = 'input window, operand 3, single buffered']
    #allocation4 [shape = 's32[1]{0}', space=sflag, size = 0x4, scoped, tag = 'scoped memory for apply.1']
    #allocation5 [shape = 's32[1]{0}', space=sflag, size = 0x4, scoped, tag = 'scoped memory for apply.1']
    #allocation6 [shape = 'u8[8192]{0}', space=vmem, size = 0x2000, scoped, tag = 'output window, operand 0, single buffered']
    %10 = vsyncpa [#allocation4], 0
    %11 = vsyncpa [#allocation5], 0
    // Predicated region
    $region2: #{apply.1} parent=1 // pred_check
      _
    $region3: #{apply.1} parent=1 // pred_check_branch
      %13 = sbr.rel (0) target = $region5
    $region4: #{apply.1} parent=1 // pred_region
      _
    $region5: #{apply.1} parent=1 // pred_fallthru
      _
    // Predicated region
    $region6: #{apply.1} parent=1 // pred_check
      _
    $region7: #{apply.1} parent=1 // pred_check_branch
      %15 = sbr.rel (0) target = $region9
    $region8: #{apply.1} parent=1 // pred_region
      _
    $region9: #{apply.1} parent=1 // pred_fallthru
      _
    // Predicated region
    $region10: #{apply.1} parent=1 // pred_check
      _
    $region11: #{apply.1} parent=1 // pred_check_branch
      %17 = sbr.rel (0) target = $region13
    $region12: #{apply.1} parent=1 // pred_region
      _
    $region13: #{apply.1} parent=1 // pred_fallthru
      _
    // Predicated region
    $region14: #{apply.1} parent=1 // pred_check
      _
    $region15: #{apply.1} parent=1 // pred_check_branch
      %19 = sbr.rel (0) target = $region17
    $region16: #{apply.1} parent=1 // pred_region
      %s21 = ssub.s32 1024, 1024
      %22 = vsyncadd [#allocation4], %s21
      %s23 = sshll.u32 [#allocation3], 4
      %s24 = int_to_ptr.vmem [resolvable:$true] %s23
      %29 = dma.hbm_to_vmem [thread:$0]  %s3, 1024, %s24, [#allocation4], 64, 64, 4
    $region17: #{apply.1} parent=1 // pred_fallthru
      _
    // Predicated region
    $region18: #{apply.1} parent=1 // pred_check
      _
    $region19: #{apply.1} parent=1 // pred_check_branch
      %31 = sbr.rel (0) target = $region21
    $region20: #{apply.1} parent=1 // pred_region
      _
    $region21: #{apply.1} parent=1 // pred_fallthru
      _
    // Predicated region
    $region22: #{apply.1} parent=1 // pred_check
      _
    $region23: #{apply.1} parent=1 // pred_check_branch
      %33 = sbr.rel (0) target = $region25
    $region24: #{apply.1} parent=1 // pred_region
      %34 = dma.done [#allocation4], 1024
    $region25: #{apply.1} parent=1 // pred_fallthru
      _
    %p36 = scmp.eq.s32.totalorder 0, 0
    // Predicated region
    $region26: #{apply.1} parent=1 // pred_check
      %p37 = pneg %p36
    $region27: #{apply.1} parent=1 // pred_check_branch
      %39 = sbr.rel (%p37) target = $region29
    $region28: #{apply.1} parent=1 // pred_region
      %v40 = vld [vmem:[%s4] sm:$0x1]
      %v42 = vlaneseq
      %v43 = vshrl.u32 %v42, 7
      %v44 = vsub.s32 0, %v43
      %v45 = vrot.slane %v40, %v44
      %vm47 = vcmask 261120
      %48 = vst.msk [vmem:[#allocation2] sm:$0xff] %vm47, %v45
      %49 = vst.msk [vmem:[#allocation2 + $0x8] sm:$0xff] %vm47, %v45
    $region29: #{apply.1} parent=1 // pred_fallthru
      _
    %v50 = vld [vmem:[%s0] sm:$0xf]
    %v51 = vld [vmem:[%s0 + $0x4] sm:$0xf]
    %v52 = vld [vmem:[%s1] sm:$0xf]
    %v53 = vld [vmem:[%s1 + $0x4] sm:$0xf]
    %v54 = vld [vmem:[%s1 + $0x8] sm:$0xf]
    %v55 = vld [vmem:[%s1 + $0xc] sm:$0xf]
    %v56 = vld [vmem:[%s2] sm:$0x1]
    %v58 = vlaneseq
    %v59 = vshrl.u32 %v58, 7
    %v60 = vsub.s32 0, %v59
    %v61 = vrot.slane %v56, %v60
    %v65 = vunpack.c.l.b16 %v50
    %v66 = vunpack.c.l.b16 %v51
    %v67 = vpack.c.b16 %v66, %v65
    %v72 = vunpack.c.l.b16 %v52
    %v73 = vunpack.c.l.b16 %v53
    %v74 = vunpack.c.l.b16 %v54
    %v75 = vunpack.c.l.b16 %v55
    %v76 = vpack.c.b16 %v73, %v72
    %v77 = vpack.c.b16 %v75, %v74
    %vm80 = vcmask 261120
    %v82 = vsel %vm80, %v67, 0
    %84 = vmatprep.subr.bf16.mxu0 0
    %85 = vmatpush1.bf16.msra.mxu0 %v76
    %86 = vmatprep.subr.bf16.mxu0 0
    %87 = vmatpush1.bf16.msra.mxu0 %v77
    %88 = vmatprep.subr.bf16.mxu0 0
    %89 = vmatpush1.bf16.msra.mxu0 0
    %90 = vmatprep.subr.bf16.mxu0 0
    %91 = vmatpush1.bf16.msra.mxu0 0
    %92 = vmatprep.subr.bf16.mxu0 0
    %93 = vmatpush1.bf16.msra.mxu0 0
    %94 = vmatprep.subr.bf16.mxu0 0
    %95 = vmatpush1.bf16.msra.mxu0 0
    %96 = vmatprep.subr.bf16.mxu0 0
    %97 = vmatpush1.bf16.msra.mxu0 0
    %98 = vmatprep.subr.bf16.mxu0 0
    %99 = vmatpush1.bf16.msra.mxu0 0
    %100 = vmatprep.subr.bf16.mxu0 0
    %101 = vmatpush1.bf16.msra.mxu0 0
    %102 = vmatprep.subr.bf16.mxu0 0
    %103 = vmatpush1.bf16.msra.mxu0 0
    %104 = vmatprep.subr.bf16.mxu0 0
    %105 = vmatpush1.bf16.msra.mxu0 0
    %106 = vmatprep.subr.bf16.mxu0 0
    %107 = vmatpush1.bf16.msra.mxu0 0
    %108 = vmatprep.subr.bf16.mxu0 0
    %109 = vmatpush1.bf16.msra.mxu0 0
    %110 = vmatprep.subr.bf16.mxu0 0
    %111 = vmatpush1.bf16.msra.mxu0 0
    %112 = vmatprep.subr.bf16.mxu0 0
    %113 = vmatpush1.bf16.msra.mxu0 0
    %114 = vmatprep.subr.bf16.mxu0 0
    %115 = vmatpush1.bf16.msra.mxu0 0
    %116 = vmatprep.mubr.bf16.mxu0 0
    %117 = vmatmul.mubr.bf16.gmra.mrb[0].mxu0 %v82
    %v118 = vpop.f32.mrb[0].mxu0
    %v119 = vadd.f32 %v61, %v118
    %v120 = vpop.f32.mrb[0].mxu0
    %v121 = vpop.f32.mrb[0].mxu0
    %v122 = vadd.f32 %v61, %v121
    %v123 = vpop.f32.mrb[0].mxu0
    %124 = vdwg.mxu0
    %v125 = vmax.f32 %v119, 0.0
    %v126 = vmax.f32 %v122, 0.0
    %v127 = vld [vmem:[#allocation2] sm:$0xff]
    %v128 = vld [vmem:[#allocation2 + $0x8] sm:$0xff]
    %v129 = vpack.c.bf16 %v126, %v125
    %v130 = vld [vmem:[#allocation3] sm:$0xf]
    %v131 = vld [vmem:[#allocation3 + $0x4] sm:$0xf]
    %v132 = vld [vmem:[#allocation3 + $0x8] sm:$0xf]
    %v133 = vld [vmem:[#allocation3 + $0xc] sm:$0xf]
    %v134 = vld [vmem:[#allocation3 + $0x10] sm:$0xf]
    %v135 = vld [vmem:[#allocation3 + $0x14] sm:$0xf]
    %v136 = vld [vmem:[#allocation3 + $0x18] sm:$0xf]
    %v137 = vld [vmem:[#allocation3 + $0x1c] sm:$0xf]
    %v138 = vld [vmem:[#allocation3 + $0x20] sm:$0xf]
    %v139 = vld [vmem:[#allocation3 + $0x24] sm:$0xf]
    %v140 = vld [vmem:[#allocation3 + $0x28] sm:$0xf]
    %v141 = vld [vmem:[#allocation3 + $0x2c] sm:$0xf]
    %v142 = vld [vmem:[#allocation3 + $0x30] sm:$0xf]
    %v143 = vld [vmem:[#allocation3 + $0x34] sm:$0xf]
    %v144 = vld [vmem:[#allocation3 + $0x38] sm:$0xf]
    %v145 = vld [vmem:[#allocation3 + $0x3c] sm:$0xf]
    %v162 = vunpack.c.l.b16 %v130
    %v163 = vunpack.c.l.b16 %v131
    %v164 = vunpack.c.l.b16 %v132
    %v165 = vunpack.c.l.b16 %v133
    %v166 = vunpack.c.l.b16 %v134
    %v167 = vunpack.c.l.b16 %v135
    %v168 = vunpack.c.l.b16 %v136
    %v169 = vunpack.c.l.b16 %v137
    %v170 = vunpack.c.l.b16 %v138
    %v171 = vunpack.c.l.b16 %v139
    %v172 = vunpack.c.l.b16 %v140
    %v173 = vunpack.c.l.b16 %v141
    %v174 = vunpack.c.l.b16 %v142
    %v175 = vunpack.c.l.b16 %v143
    %v176 = vunpack.c.l.b16 %v144
    %v177 = vunpack.c.l.b16 %v145
    %v178 = vpack.c.b16 %v163, %v162
    %v179 = vpack.c.b16 %v165, %v164
    %v180 = vpack.c.b16 %v167, %v166
    %v181 = vpack.c.b16 %v169, %v168
    %v182 = vpack.c.b16 %v171, %v170
    %v183 = vpack.c.b16 %v173, %v172
    %v184 = vpack.c.b16 %v175, %v174
    %v185 = vpack.c.b16 %v177, %v176
    %194 = vmatprep.subr.bf16.mxu0 0
    %195 = vmatpush1.bf16.msra.mxu0 %v178
    %196 = vmatprep.subr.bf16.mxu0 0
    %197 = vmatpush1.bf16.msra.mxu0 %v179
    %198 = vmatprep.subr.bf16.mxu0 0
    %199 = vmatpush1.bf16.msra.mxu0 %v180
    %200 = vmatprep.subr.bf16.mxu0 0
    %201 = vmatpush1.bf16.msra.mxu0 %v181
    %202 = vmatprep.subr.bf16.mxu0 0
    %203 = vmatpush1.bf16.msra.mxu0 %v182
    %204 = vmatprep.subr.bf16.mxu0 0
    %205 = vmatpush1.bf16.msra.mxu0 %v183
    %206 = vmatprep.subr.bf16.mxu0 0
    %207 = vmatpush1.bf16.msra.mxu0 %v184
    %208 = vmatprep.subr.bf16.mxu0 0
    %209 = vmatpush1.bf16.msra.mxu0 %v185
    %210 = vmatprep.subr.bf16.mxu0 0
    %211 = vmatpush1.bf16.msra.mxu0 0
    %212 = vmatprep.subr.bf16.mxu0 0
    %213 = vmatpush1.bf16.msra.mxu0 0
    %214 = vmatprep.subr.bf16.mxu0 0
    %215 = vmatpush1.bf16.msra.mxu0 0
    %216 = vmatprep.subr.bf16.mxu0 0
    %217 = vmatpush1.bf16.msra.mxu0 0
    %218 = vmatprep.subr.bf16.mxu0 0
    %219 = vmatpush1.bf16.msra.mxu0 0
    %220 = vmatprep.subr.bf16.mxu0 0
    %221 = vmatpush1.bf16.msra.mxu0 0
    %222 = vmatprep.subr.bf16.mxu0 0
    %223 = vmatpush1.bf16.msra.mxu0 0
    %224 = vmatprep.subr.bf16.mxu0 0
    %225 = vmatpush1.bf16.msra.mxu0 0
    %226 = vmatprep.mubr.bf16.mxu0 0
    %227 = vmatmul.mubr.bf16.gmra.mrb[0].mxu0 %v129
    %v228 = vpop.f32.mrb[0].mxu0
    %v229 = vadd.f32 0.0, %v228
    %v230 = vpop.f32.mrb[0].mxu0
    %v231 = vpop.f32.mrb[0].mxu0
    %v232 = vadd.f32 0.0, %v231
    %v233 = vpop.f32.mrb[0].mxu0
    %234 = vdwg.mxu0
    %v235 = vadd.f32 %v127, %v229
    %v236 = vadd.f32 %v128, %v232
    %237 = vst.msk [vmem:[#allocation2] sm:$0xff] %vm80, %v235
    %238 = vst.msk [vmem:[#allocation2 + $0x8] sm:$0xff] %vm80, %v236
    // Predicated region
    $region30: #{apply.1} parent=1 // pred_check
      %p239 = pneg %p36
    $region31: #{apply.1} parent=1 // pred_check_branch
      %241 = sbr.rel (%p239) target = $region33
    $region32: #{apply.1} parent=1 // pred_region
      %v242 = vld [vmem:[#allocation2] sm:$0xff]
      %v243 = vld [vmem:[#allocation2 + $0x8] sm:$0xff]
      %244 = vst.msk [vmem:[#allocation6] sm:$0xff] %vm80, %v242
      %245 = vst.msk [vmem:[#allocation6 + $0x8] sm:$0xff] %vm80, %v243
    $region33: #{apply.1} parent=1 // pred_fallthru
      _
    // Predicated region
    $region34: #{apply.1} parent=1 // pred_check
      _
    $region35: #{apply.1} parent=1 // pred_check_branch
      %247 = sbr.rel (0) target = $region37
    $region36: #{apply.1} parent=1 // pred_region
      %s249 = ssub.s32 256, 256
      %250 = vsyncadd [#allocation5], %s249
      %s251 = sshll.u32 [#allocation6], 4
      %s252 = int_to_ptr.vmem [resolvable:$true] %s251
      %257 = dma.vmem_to_hbm [thread:$0]  %s252, 256, %s5, [#allocation5], 128, 128, 8
    $region37: #{apply.1} parent=1 // pred_fallthru
      _
    // Predicated region
    $region38: #{apply.1} parent=1 // pred_check
      _
    $region39: #{apply.1} parent=1 // pred_check_branch
      %259 = sbr.rel (0) target = $region41
    $region40: #{apply.1} parent=1 // pred_region
      %260 = dma.done [#allocation5], 256
    $region41: #{apply.1} parent=1 // pred_fallthru
      _
    %261 = vsyncpa [#allocation4], 1
    %262 = vsyncpa [#allocation5], 1

</llo_original>
